<compile_context>
chip_gen: v6e
topology: v6e:2x2x1
jax: 0.10.0
libtpu: 0.0.40
codegen_flags: <defaults>
</compile_context>

<pallas_src>
import jax
import jax.numpy as jnp
from jax.experimental import pallas as pl
from jax.experimental.pallas import tpu as pltpu

C_IN, C_H1, C_H2, C_OUT = 32, 16, 8, 3


def _round_up(x, m):
    return (x + m - 1) // m * m


def _cdiv(a, b):
    return (a + b - 1) // b


def _nocs_kernel(x_ref, m_ref, w1_ref, b1_ref, w2_ref, b2_ref, w3_ref, b3_ref,
                 o_ref):
    # x_ref: (32, TN) native dtype, m_ref: (1, TN) native dtype,
    # weights (out, in) f32, biases (out, 1) f32, o_ref: (3, TN) f32.
    x = x_ref[...].astype(jnp.float32) * m_ref[...].astype(jnp.float32)
    h1 = jnp.dot(w1_ref[...], x, preferred_element_type=jnp.float32)
    h1 = jnp.maximum(h1 + b1_ref[...], 0.0)
    h2 = jnp.dot(w2_ref[...], h1, preferred_element_type=jnp.float32)
    h2 = jnp.maximum(h2 + b2_ref[...], 0.0)
    out = jnp.dot(w3_ref[...], h2, preferred_element_type=jnp.float32)
    o_ref[...] = (out + b3_ref[...]).astype(o_ref.dtype)


def nocs_forward(inputs, mask, params, *, tile_n=32768):
    """inputs: (bs, 32, H, W), mask: (bs, 1, H, W). Returns (bs, 3, H, W) f32."""
    bs, c, h, w = inputs.shape
    assert c == C_IN
    L = h * w

    # Free reshapes only: channel-major layout is kept, pixels become lanes.
    x = inputs.reshape(bs, C_IN, L)
    m = mask.reshape(bs, 1, L)

    # Lane-aligned pixel tile, clamped to the problem size.
    tile_n = max(128, _round_up(min(tile_n, _round_up(L, 128)), 128))
    n_tiles = _cdiv(L, tile_n)

    # Keep >= 4 total grid steps when possible so both v7x TensorCores get
    # work (grid axes are "parallel"); no effect on large images.
    min_total_steps = 4
    if bs * n_tiles < min_total_steps and L > 128:
        per_batch = _cdiv(min_total_steps, bs)
        tile_n = max(128, _round_up(_cdiv(L, per_batch), 128))
        n_tiles = _cdiv(L, tile_n)

    w1, b1, w2, b2, w3, b3 = params
    w1 = w1.astype(jnp.float32); b1 = b1.astype(jnp.float32)
    w2 = w2.astype(jnp.float32); b2 = b2.astype(jnp.float32)
    w3 = w3.astype(jnp.float32); b3 = b3.astype(jnp.float32)

    grid = (bs, n_tiles)
    tile_map = lambda b, t: (b, 0, t)      # per-(batch, pixel-tile) block
    resident = lambda b, t: (0, 0)         # weights/biases stay resident

    out = pl.pallas_call(
        _nocs_kernel,
        out_shape=jax.ShapeDtypeStruct((bs, C_OUT, L), jnp.float32),
        grid_spec=pltpu.PrefetchScalarGridSpec(
            num_scalar_prefetch=0,
            grid=grid,
            in_specs=[
                pl.BlockSpec((None, C_IN, tile_n), tile_map),   # x block (32, TN)
                pl.BlockSpec((None, 1, tile_n), tile_map),      # mask block (1, TN)
                pl.BlockSpec((C_H1, C_IN), resident),           # W1 (16, 32)
                pl.BlockSpec((C_H1, 1), resident),              # b1 (16, 1)
                pl.BlockSpec((C_H2, C_H1), resident),           # W2 (8, 16)
                pl.BlockSpec((C_H2, 1), resident),              # b2 (8, 1)
                pl.BlockSpec((C_OUT, C_H2), resident),          # W3 (3, 8)
                pl.BlockSpec((C_OUT, 1), resident),             # b3 (3, 1)
            ],
            out_specs=pl.BlockSpec((None, C_OUT, tile_n), tile_map),
        ),
        compiler_params=pltpu.CompilerParams(
            dimension_semantics=("parallel", "parallel"),
            vmem_limit_bytes=48 * 1024 * 1024),
    )(x, m, w1, b1, w2, b2, w3, b3)

    return out.reshape(bs, C_OUT, h, w)


def init_params(key):
    """Deterministic synthetic init matching Conv1d layout: W is (out, in)
    (i.e. Conv1d weight (out, in, 1) squeezed), bias is (out, 1)."""
    ks = jax.random.split(key, 6)

    def conv1x1(k_w, k_b, cin, cout):
        bound = 1.0 / jnp.sqrt(cin)
        w = jax.random.uniform(k_w, (cout, cin), jnp.float32, -bound, bound)
        b = jax.random.uniform(k_b, (cout, 1), jnp.float32, -bound, bound)
        return w, b

    w1, b1 = conv1x1(ks[0], ks[1], C_IN, C_H1)
    w2, b2 = conv1x1(ks[2], ks[3], C_H1, C_H2)
    w3, b3 = conv1x1(ks[4], ks[5], C_H2, C_OUT)
    return (w1, b1, w2, b2, w3, b3)


def _reference(inputs, mask, params):
    w1, b1, w2, b2, w3, b3 = params
    bs, c, h, w = inputs.shape
    hi = jax.lax.Precision.HIGHEST
    x = (inputs.astype(jnp.float32) * mask.astype(jnp.float32)).reshape(bs, c, -1)
    x = jnp.einsum("oc,bcl->bol", w1, x, precision=hi) + b1[None]
    x = jnp.maximum(x, 0.0)
    x = jnp.einsum("oc,bcl->bol", w2, x, precision=hi) + b2[None]
    x = jnp.maximum(x, 0.0)
    x = jnp.einsum("oc,bcl->bol", w3, x, precision=hi) + b3[None]
    return x.reshape(bs, C_OUT, h, w)


if __name__ == "__main__":
    key = jax.random.PRNGKey(0)
    k_in, k_mask, k_par, k_in2, k_mask2 = jax.random.split(key, 5)

    params = init_params(k_par)

    # Case 1: small, lane-aligned spatial size (f32 inputs).
    bs, H, W = 2, 16, 16
    inputs = jax.random.normal(k_in, (bs, C_IN, H, W), jnp.float32)
    mask = (jax.random.uniform(k_mask, (bs, 1, H, W)) > 0.5).astype(jnp.float32)

    out = jax.block_until_ready(nocs_forward(inputs, mask, params))
    ref = _reference(inputs, mask, params)
    assert out.shape == (bs, C_OUT, H, W)
    assert jnp.allclose(out, ref, atol=2e-3, rtol=2e-3), \
        float(jnp.max(jnp.abs(out - ref)))

    # Case 2: non-128-divisible spatial size -> exercises the ragged last tile
    # (no jnp.pad, OOB stores dropped by Pallas).
    bs2, H2, W2 = 1, 10, 10
    inputs2 = jax.random.normal(k_in2, (bs2, C_IN, H2, W2), jnp.float32)
    mask2 = (jax.random.uniform(k_mask2, (bs2, 1, H2, W2)) > 0.5).astype(jnp.float32)

    out2 = jax.block_until_ready(nocs_forward(inputs2, mask2, params))
    ref2 = _reference(inputs2, mask2, params)
    assert out2.shape == (bs2, C_OUT, H2, W2)
    assert jnp.allclose(out2, ref2, atol=2e-3, rtol=2e-3), \
        float(jnp.max(jnp.abs(out2 - ref2)))

    # Case 3: bf16 activations/mask pass through in native dtype (no wrapper
    # astype); the kernel widens to f32 internally.
    inputs3 = inputs.astype(jnp.bfloat16)
    mask3 = mask.astype(jnp.bfloat16)
    out3 = jax.block_until_ready(nocs_forward(inputs3, mask3, params))
    ref3 = _reference(inputs3, mask3, params)
    assert jnp.allclose(out3, ref3, atol=2e-3, rtol=2e-3), \
        float(jnp.max(jnp.abs(out3 - ref3)))

    print("KERNEL_OK")
</pallas_src>

<mosaic_0001>
module attributes {stable_mosaic.version = 11 : i64} {
  func.func @_nocs_kernel(%arg0: i32, %arg1: i32, %arg2: memref<1x32x128xf32, #tpu.memory_space<vmem>>, %arg3: memref<1x1x128xf32, #tpu.memory_space<vmem>>, %arg4: memref<16x32xf32, #tpu.memory_space<vmem>>, %arg5: memref<16x1xf32, #tpu.memory_space<vmem>>, %arg6: memref<8x16xf32, #tpu.memory_space<vmem>>, %arg7: memref<8x1xf32, #tpu.memory_space<vmem>>, %arg8: memref<3x8xf32, #tpu.memory_space<vmem>>, %arg9: memref<3x1xf32, #tpu.memory_space<vmem>>, %arg10: memref<1x3x128xf32, #tpu.memory_space<vmem>>) attributes {dimension_semantics = [#tpu.dimension_semantics<parallel>, #tpu.dimension_semantics<parallel>], iteration_bounds = array<i64: 2, 2>, scalar_prefetch = 0 : i64, scratch_operands = 0 : i64, tpu.core_type = #tpu.core_type<tc>, window_params = [{transform_indices = @transform_0, window_bounds = array<i64: 1, 32, 128>}, {transform_indices = @transform_1, window_bounds = array<i64: 1, 1, 128>}, {pipeline_mode = #tpu.pipeline_mode<synchronous>, transform_indices = @transform_2, window_bounds = array<i64: 16, 32>}, {pipeline_mode = #tpu.pipeline_mode<synchronous>, transform_indices = @transform_3, window_bounds = array<i64: 16, 1>}, {pipeline_mode = #tpu.pipeline_mode<synchronous>, transform_indices = @transform_4, window_bounds = array<i64: 8, 16>}, {pipeline_mode = #tpu.pipeline_mode<synchronous>, transform_indices = @transform_5, window_bounds = array<i64: 8, 1>}, {pipeline_mode = #tpu.pipeline_mode<synchronous>, transform_indices = @transform_6, window_bounds = array<i64: 3, 8>}, {pipeline_mode = #tpu.pipeline_mode<synchronous>, transform_indices = @transform_7, window_bounds = array<i64: 3, 1>}, {transform_indices = @transform_8, window_bounds = array<i64: 1, 3, 128>}]} {
    %c0 = arith.constant 0 : index
    %c0_0 = arith.constant 0 : index
    %c0_1 = arith.constant 0 : index
    %0 = vector.load %arg2[%c0, %c0_0, %c0_1] : memref<1x32x128xf32, #tpu.memory_space<vmem>>, vector<1x32x128xf32>
    %1 = vector.shape_cast %0 : vector<1x32x128xf32> to vector<32x128xf32>
    %c0_2 = arith.constant 0 : index
    %c0_3 = arith.constant 0 : index
    %c0_4 = arith.constant 0 : index
    %2 = vector.load %arg3[%c0_2, %c0_3, %c0_4] : memref<1x1x128xf32, #tpu.memory_space<vmem>>, vector<1x1x128xf32>
    %3 = vector.shape_cast %2 : vector<1x1x128xf32> to vector<1x128xf32>
    %4 = vector.broadcast %3 : vector<1x128xf32> to vector<32x128xf32>
    %5 = arith.mulf %1, %4 : vector<32x128xf32>
    %c0_5 = arith.constant 0 : index
    %c0_6 = arith.constant 0 : index
    %6 = vector.load %arg4[%c0_5, %c0_6] : memref<16x32xf32, #tpu.memory_space<vmem>>, vector<16x32xf32>
    %cst = arith.constant dense<0.000000e+00> : vector<16x128xf32>
    %7 = tpu.matmul %6, %5, %cst {dimension_numbers = #tpu.dot_dimension_numbers<[1], [0], [0], [1], [0, 0, 1, 1], [], []>} : vector<16x32xf32>, vector<32x128xf32>, vector<16x128xf32> -> vector<16x128xf32>
    %c0_7 = arith.constant 0 : index
    %c0_8 = arith.constant 0 : index
    %8 = vector.load %arg5[%c0_7, %c0_8] : memref<16x1xf32, #tpu.memory_space<vmem>>, vector<16x1xf32>
    %9 = vector.broadcast %8 : vector<16x1xf32> to vector<16x128xf32>
    %10 = arith.addf %7, %9 : vector<16x128xf32>
    %cst_9 = arith.constant 0.000000e+00 : f32
    %11 = vector.broadcast %cst_9 : f32 to vector<16x128xf32>
    %12 = arith.maximumf %10, %11 : vector<16x128xf32>
    %c0_10 = arith.constant 0 : index
    %c0_11 = arith.constant 0 : index
    %13 = vector.load %arg6[%c0_10, %c0_11] : memref<8x16xf32, #tpu.memory_space<vmem>>, vector<8x16xf32>
    %cst_12 = arith.constant dense<0.000000e+00> : vector<8x128xf32>
    %14 = tpu.matmul %13, %12, %cst_12 {dimension_numbers = #tpu.dot_dimension_numbers<[1], [0], [0], [1], [0, 0, 1, 1], [], []>} : vector<8x16xf32>, vector<16x128xf32>, vector<8x128xf32> -> vector<8x128xf32>
    %c0_13 = arith.constant 0 : index
    %c0_14 = arith.constant 0 : index
    %15 = vector.load %arg7[%c0_13, %c0_14] : memref<8x1xf32, #tpu.memory_space<vmem>>, vector<8x1xf32>
    %16 = vector.broadcast %15 : vector<8x1xf32> to vector<8x128xf32>
    %17 = arith.addf %14, %16 : vector<8x128xf32>
    %cst_15 = arith.constant 0.000000e+00 : f32
    %18 = vector.broadcast %cst_15 : f32 to vector<8x128xf32>
    %19 = arith.maximumf %17, %18 : vector<8x128xf32>
    %c0_16 = arith.constant 0 : index
    %c0_17 = arith.constant 0 : index
    %20 = vector.load %arg8[%c0_16, %c0_17] : memref<3x8xf32, #tpu.memory_space<vmem>>, vector<3x8xf32>
    %cst_18 = arith.constant dense<0.000000e+00> : vector<3x128xf32>
    %21 = tpu.matmul %20, %19, %cst_18 {dimension_numbers = #tpu.dot_dimension_numbers<[1], [0], [0], [1], [0, 0, 1, 1], [], []>} : vector<3x8xf32>, vector<8x128xf32>, vector<3x128xf32> -> vector<3x128xf32>
    %c0_19 = arith.constant 0 : index
    %c0_20 = arith.constant 0 : index
    %22 = vector.load %arg9[%c0_19, %c0_20] : memref<3x1xf32, #tpu.memory_space<vmem>>, vector<3x1xf32>
    %23 = vector.broadcast %22 : vector<3x1xf32> to vector<3x128xf32>
    %24 = arith.addf %21, %23 : vector<3x128xf32>
    %c0_21 = arith.constant 0 : index
    %c0_22 = arith.constant 0 : index
    %c0_23 = arith.constant 0 : index
    %25 = vector.load %arg10[%c0_21, %c0_22, %c0_23] : memref<1x3x128xf32, #tpu.memory_space<vmem>>, vector<1x3x128xf32>
    %26 = vector.shape_cast %25 : vector<1x3x128xf32> to vector<3x128xf32>
    %27 = vector.shape_cast %24 : vector<3x128xf32> to vector<1x3x128xf32>
    tpu.vector_store %arg10[%c0_21, %c0_22, %c0_23], %27 {strides = array<i32>} : memref<1x3x128xf32, #tpu.memory_space<vmem>>, vector<1x3x128xf32>,
    return
  }
  func.func @transform_0(%arg0: i32, %arg1: i32) -> (i32, i32, i32) {
    %c0_i32 = arith.constant 0 : i32
    %c0_i32_0 = arith.constant 0 : i32
    return %arg0, %c0_i32, %arg1 : i32, i32, i32
  }
  func.func @transform_1(%arg0: i32, %arg1: i32) -> (i32, i32, i32) {
    %c0_i32 = arith.constant 0 : i32
    %c0_i32_0 = arith.constant 0 : i32
    return %arg0, %c0_i32, %arg1 : i32, i32, i32
  }
  func.func @transform_2(%arg0: i32, %arg1: i32) -> (i32, i32) {
    %c0_i32 = arith.constant 0 : i32
    %c0_i32_0 = arith.constant 0 : i32
    %c0_i32_1 = arith.constant 0 : i32
    return %c0_i32, %c0_i32_0 : i32, i32
  }
  func.func @transform_3(%arg0: i32, %arg1: i32) -> (i32, i32) {
    %c0_i32 = arith.constant 0 : i32
    %c0_i32_0 = arith.constant 0 : i32
    %c0_i32_1 = arith.constant 0 : i32
    return %c0_i32, %c0_i32_0 : i32, i32
  }
  func.func @transform_4(%arg0: i32, %arg1: i32) -> (i32, i32) {
    %c0_i32 = arith.constant 0 : i32
    %c0_i32_0 = arith.constant 0 : i32
    %c0_i32_1 = arith.constant 0 : i32
    return %c0_i32, %c0_i32_0 : i32, i32
  }
  func.func @transform_5(%arg0: i32, %arg1: i32) -> (i32, i32) {
    %c0_i32 = arith.constant 0 : i32
    %c0_i32_0 = arith.constant 0 : i32
    %c0_i32_1 = arith.constant 0 : i32
    return %c0_i32, %c0_i32_0 : i32, i32
  }
  func.func @transform_6(%arg0: i32, %arg1: i32) -> (i32, i32) {
    %c0_i32 = arith.constant 0 : i32
    %c0_i32_0 = arith.constant 0 : i32
    %c0_i32_1 = arith.constant 0 : i32
    return %c0_i32, %c0_i32_0 : i32, i32
  }
  func.func @transform_7(%arg0: i32, %arg1: i32) -> (i32, i32) {
    %c0_i32 = arith.constant 0 : i32
    %c0_i32_0 = arith.constant 0 : i32
    %c0_i32_1 = arith.constant 0 : i32
    return %c0_i32, %c0_i32_0 : i32, i32
  }
  func.func @transform_8(%arg0: i32, %arg1: i32) -> (i32, i32, i32) {
    %c0_i32 = arith.constant 0 : i32
    %c0_i32_0 = arith.constant 0 : i32
    return %arg0, %c0_i32, %arg1 : i32, i32, i32
  }
}

</mosaic_0001>

<llo_original>
// kernel: tpu_custom_call.1
$region0: #{tpu_custom_call.1}
  #allocation0 [shape = 'u32[]', space=smem, size = 0x4, offset = 0x4, fixed_abs, tag = 'smem constant byte address 0x4 - core index']
  #allocation1 [shape = 'u32[144,128]{1,0:T(1,128)}', space=vmem, size = 0x12000, scoped, tag = 'internal scratch']
  %s0 = inlined_call_operand.hbm [shape: f32[2,32,256], index: 0, kind: input, shape index: {}]
  %s1 = inlined_call_operand.vmem [shape: f32[2,1,256], index: 1, kind: input, shape index: {}]
  %s2 = inlined_call_operand.vmem [shape: f32[16,32], index: 2, kind: input, shape index: {}]
  %s3 = inlined_call_operand.vmem [shape: f32[16,1], index: 3, kind: input, shape index: {}]
  %s4 = inlined_call_operand.vmem [shape: f32[8,16], index: 4, kind: input, shape index: {}]
  %s5 = inlined_call_operand.vmem [shape: f32[8,1], index: 5, kind: input, shape index: {}]
  %s6 = inlined_call_operand.vmem [shape: f32[3,8], index: 6, kind: input, shape index: {}]
  %s7 = inlined_call_operand.vmem [shape: f32[3,1], index: 7, kind: input, shape index: {}]
  %s8 = inlined_call_operand.vmem [shape: f32[2,3,256], index: 8, kind: output, shape index: {}]
  %s9 = sld [smem:[#allocation0]]
  $region69: #{tpu_custom_call.1} parent=0
    _
  %s11 = ssub.s32 1, %s9
  %s12 = scalar_select 0, %s11, %s9
  $region1: #{tpu_custom_call.1} parent=0
    #allocation2 [shape = 'u8[32768]{0}', space=vmem, size = 0x8000, scoped, tag = 'input window, operand 0']
    #allocation3 [shape = 's32[2]{0}', space=sflag, size = 0x8, scoped, tag = 'scoped memory for tpu_custom_call.1']
    %13 = vsyncpa [#allocation3], 0
    %s14 = scalar_lea.sflag [#allocation3], 1
    %15 = vsyncpa %s14, 0
    loop: start=0, step=1, limit=6
    $region2: #{tpu_custom_call.1} parent=1 // loop_pre_header
      _
    $region3: #{tpu_custom_call.1} parent=1 // loop_header
      %s17 = sphi 0, %s21
      %p18 = scmp.ge.s32.totalorder %s17, 6
      %s24 = sphi 0, %s36
      %s25 = sphi 0, %s32
      %s26 = sphi 0, %s24
      %s27 = sphi 0, %s25
      %s28 = sphi 0, %s26
      %s29 = sphi 0, %s27
      %s41 = sphi 0, %s43
      %s44 = sphi 0, %s41
      %s45 = sphi 0, %s44
      %s61 = sphi 0, %s45
      %s69 = sphi 0, %s71
      %s72 = sphi 0, %s69
      %s73 = sphi 0, %s72
      %s89 = sphi 0, %s73
      %s93 = sphi 0, %s93
      %s95 = sphi 0, %s93
      %s96 = sphi 0, %s95
      %s110 = sphi 0, %s96
      %s114 = sphi 0, %s114
      %s116 = sphi 0, %s114
      %s117 = sphi 0, %s116
      %s131 = sphi 0, %s117
      %s135 = sphi 0, %s135
      %s137 = sphi 0, %s135
      %s138 = sphi 0, %s137
      %s152 = sphi 0, %s138
      %s156 = sphi 0, %s156
      %s158 = sphi 0, %s156
      %s159 = sphi 0, %s158
      %s173 = sphi 0, %s159
      %s177 = sphi 0, %s177
      %s179 = sphi 0, %s177
      %s180 = sphi 0, %s179
      %s194 = sphi 0, %s180
      %s198 = sphi 0, %s198
      %s200 = sphi 0, %s198
      %s201 = sphi 0, %s200
      %s215 = sphi 0, %s201
      %s223 = sphi 0, %s225
      %s226 = sphi 0, %s223
      %s227 = sphi 0, %s226
      %s243 = sphi 0, %s227
    $region4: #{tpu_custom_call.1} parent=1 // loop_header_branch
      %20 = sbr.rel (%p18) target = $region8
    $region5: #{tpu_custom_call.1} parent=1 // loop_body
      %s22 = ssub.s32 %s17, 1
      %s23 = ssub.s32 %s17, 2
      %s30 = sadd.s32 1, %s25
      %p31 = scmp.ge.s32.totalorder %s30, 2
      %s32 = scalar_select %p31, 0, %s30
      %s33 = sadd.s32 1, %s24
      %s34 = scalar_select %p31, %s33, %s24
      %p35 = scmp.ge.s32.totalorder %s34, 2
      %s36 = scalar_select %p35, 0, %s34
      %s37 = ssub.s32 %s24, %s36
      %s38 = ssub.s32 %s25, %s32
      %s39 = sor.u32 %s37, %s38
      %p40 = scmp.eq.s32.totalorder %s39, 0
      %s42 = sadd.s32 %s41, 1
      %s43 = scalar_select %p40, %s41, %s42
      %p46 = pneg %p40
      %p47 = scmp.eq.s32.totalorder %s17, 3
      %p48 = por %p46, %p47
      %p49 = scmp.ne.s32.totalorder %s41, %s44
      %p50 = scmp.eq.s32.totalorder %s17, 0
      %p51 = por %p49, %p50
      %p52 = scmp.ne.s32.totalorder %s41, %s44
      %p53 = scmp.eq.s32.totalorder %s22, 3
      %p54 = por %p52, %p53
      %p55 = scmp.ne.s32.totalorder %s44, %s45
      %p56 = scmp.eq.s32.totalorder %s22, 0
      %p57 = por %p55, %p56
      %p58 = scmp.ne.s32.totalorder %s44, %s45
      %p59 = scmp.eq.s32.totalorder %s23, 3
      %p60 = por %p58, %p59
      %p62 = scmp.ne.s32.totalorder %s45, %s61
      %p63 = scmp.eq.s32.totalorder %s23, 0
      %p64 = por %p62, %p63
      %s65 = ssub.s32 %s24, %s36
      %s66 = ssub.s32 %s25, %s32
      %s67 = sor.u32 %s65, %s66
      %p68 = scmp.eq.s32.totalorder %s67, 0
      %s70 = sadd.s32 %s69, 1
      %s71 = scalar_select %p68, %s69, %s70
      %p74 = pneg %p68
      %p75 = scmp.eq.s32.totalorder %s17, 3
      %p76 = por %p74, %p75
      %p77 = scmp.ne.s32.totalorder %s69, %s72
      %p78 = scmp.eq.s32.totalorder %s17, 0
      %p79 = por %p77, %p78
      %p80 = scmp.ne.s32.totalorder %s69, %s72
      %p81 = scmp.eq.s32.totalorder %s22, 3
      %p82 = por %p80, %p81
      %p83 = scmp.ne.s32.totalorder %s72, %s73
      %p84 = scmp.eq.s32.totalorder %s22, 0
      %p85 = por %p83, %p84
      %p86 = scmp.ne.s32.totalorder %s72, %s73
      %p87 = scmp.eq.s32.totalorder %s23, 3
      %p88 = por %p86, %p87
      %p90 = scmp.ne.s32.totalorder %s73, %s89
      %p91 = scmp.eq.s32.totalorder %s23, 0
      %p92 = por %p90, %p91
      %s94 = sadd.s32 %s93, 1
      %p97 = scmp.eq.s32.totalorder %s17, 3
      %p98 = scmp.ne.s32.totalorder %s93, %s95
      %p99 = scmp.eq.s32.totalorder %s17, 0
      %p100 = por %p98, %p99
      %p101 = scmp.ne.s32.totalorder %s93, %s95
      %p102 = scmp.eq.s32.totalorder %s22, 3
      %p103 = por %p101, %p102
      %p104 = scmp.ne.s32.totalorder %s95, %s96
      %p105 = scmp.eq.s32.totalorder %s22, 0
      %p106 = por %p104, %p105
      %p107 = scmp.ne.s32.totalorder %s95, %s96
      %p108 = scmp.eq.s32.totalorder %s23, 3
      %p109 = por %p107, %p108
      %p111 = scmp.ne.s32.totalorder %s96, %s110
      %p112 = scmp.eq.s32.totalorder %s23, 0
      %p113 = por %p111, %p112
      %s115 = sadd.s32 %s114, 1
      %p118 = scmp.eq.s32.totalorder %s17, 3
      %p119 = scmp.ne.s32.totalorder %s114, %s116
      %p120 = scmp.eq.s32.totalorder %s17, 0
      %p121 = por %p119, %p120
      %p122 = scmp.ne.s32.totalorder %s114, %s116
      %p123 = scmp.eq.s32.totalorder %s22, 3
      %p124 = por %p122, %p123
      %p125 = scmp.ne.s32.totalorder %s116, %s117
      %p126 = scmp.eq.s32.totalorder %s22, 0
      %p127 = por %p125, %p126
      %p128 = scmp.ne.s32.totalorder %s116, %s117
      %p129 = scmp.eq.s32.totalorder %s23, 3
      %p130 = por %p128, %p129
      %p132 = scmp.ne.s32.totalorder %s117, %s131
      %p133 = scmp.eq.s32.totalorder %s23, 0
      %p134 = por %p132, %p133
      %s136 = sadd.s32 %s135, 1
      %p139 = scmp.eq.s32.totalorder %s17, 3
      %p140 = scmp.ne.s32.totalorder %s135, %s137
      %p141 = scmp.eq.s32.totalorder %s17, 0
      %p142 = por %p140, %p141
      %p143 = scmp.ne.s32.totalorder %s135, %s137
      %p144 = scmp.eq.s32.totalorder %s22, 3
      %p145 = por %p143, %p144
      %p146 = scmp.ne.s32.totalorder %s137, %s138
      %p147 = scmp.eq.s32.totalorder %s22, 0
      %p148 = por %p146, %p147
      %p149 = scmp.ne.s32.totalorder %s137, %s138
      %p150 = scmp.eq.s32.totalorder %s23, 3
      %p151 = por %p149, %p150
      %p153 = scmp.ne.s32.totalorder %s138, %s152
      %p154 = scmp.eq.s32.totalorder %s23, 0
      %p155 = por %p153, %p154
      %s157 = sadd.s32 %s156, 1
      %p160 = scmp.eq.s32.totalorder %s17, 3
      %p161 = scmp.ne.s32.totalorder %s156, %s158
      %p162 = scmp.eq.s32.totalorder %s17, 0
      %p163 = por %p161, %p162
      %p164 = scmp.ne.s32.totalorder %s156, %s158
      %p165 = scmp.eq.s32.totalorder %s22, 3
      %p166 = por %p164, %p165
      %p167 = scmp.ne.s32.totalorder %s158, %s159
      %p168 = scmp.eq.s32.totalorder %s22, 0
      %p169 = por %p167, %p168
      %p170 = scmp.ne.s32.totalorder %s158, %s159
      %p171 = scmp.eq.s32.totalorder %s23, 3
      %p172 = por %p170, %p171
      %p174 = scmp.ne.s32.totalorder %s159, %s173
      %p175 = scmp.eq.s32.totalorder %s23, 0
      %p176 = por %p174, %p175
      %s178 = sadd.s32 %s177, 1
      %p181 = scmp.eq.s32.totalorder %s17, 3
      %p182 = scmp.ne.s32.totalorder %s177, %s179
      %p183 = scmp.eq.s32.totalorder %s17, 0
      %p184 = por %p182, %p183
      %p185 = scmp.ne.s32.totalorder %s177, %s179
      %p186 = scmp.eq.s32.totalorder %s22, 3
      %p187 = por %p185, %p186
      %p188 = scmp.ne.s32.totalorder %s179, %s180
      %p189 = scmp.eq.s32.totalorder %s22, 0
      %p190 = por %p188, %p189
      %p191 = scmp.ne.s32.totalorder %s179, %s180
      %p192 = scmp.eq.s32.totalorder %s23, 3
      %p193 = por %p191, %p192
      %p195 = scmp.ne.s32.totalorder %s180, %s194
      %p196 = scmp.eq.s32.totalorder %s23, 0
      %p197 = por %p195, %p196
      %s199 = sadd.s32 %s198, 1
      %p202 = scmp.eq.s32.totalorder %s17, 3
      %p203 = scmp.ne.s32.totalorder %s198, %s200
      %p204 = scmp.eq.s32.totalorder %s17, 0
      %p205 = por %p203, %p204
      %p206 = scmp.ne.s32.totalorder %s198, %s200
      %p207 = scmp.eq.s32.totalorder %s22, 3
      %p208 = por %p206, %p207
      %p209 = scmp.ne.s32.totalorder %s200, %s201
      %p210 = scmp.eq.s32.totalorder %s22, 0
      %p211 = por %p209, %p210
      %p212 = scmp.ne.s32.totalorder %s200, %s201
      %p213 = scmp.eq.s32.totalorder %s23, 3
      %p214 = por %p212, %p213
      %p216 = scmp.ne.s32.totalorder %s201, %s215
      %p217 = scmp.eq.s32.totalorder %s23, 0
      %p218 = por %p216, %p217
      %s219 = ssub.s32 %s24, %s36
      %s220 = ssub.s32 %s25, %s32
      %s221 = sor.u32 %s219, %s220
      %p222 = scmp.eq.s32.totalorder %s221, 0
      %s224 = sadd.s32 %s223, 1
      %s225 = scalar_select %p222, %s223, %s224
      %p228 = pneg %p222
      %p229 = scmp.eq.s32.totalorder %s17, 3
      %p230 = por %p228, %p229
      %p231 = scmp.ne.s32.totalorder %s223, %s226
      %p232 = scmp.eq.s32.totalorder %s17, 0
      %p233 = por %p231, %p232
      %p234 = scmp.ne.s32.totalorder %s223, %s226
      %p235 = scmp.eq.s32.totalorder %s22, 3
      %p236 = por %p234, %p235
      %p237 = scmp.ne.s32.totalorder %s226, %s227
      %p238 = scmp.eq.s32.totalorder %s22, 0
      %p239 = por %p237, %p238
      %p240 = scmp.ne.s32.totalorder %s226, %s227
      %p241 = scmp.eq.s32.totalorder %s23, 3
      %p242 = por %p240, %p241
      %p244 = scmp.ne.s32.totalorder %s227, %s243
      %p245 = scmp.eq.s32.totalorder %s23, 0
      %p246 = por %p244, %p245
      %p247 = scmp.le.s32.totalorder 1, %s17
      %p248 = scmp.lt.s32.totalorder %s17, 5
      %p249 = pnand %p247, %p248
      %p250 = pneg %p249
      // Predicated region
      $region9: #{tpu_custom_call.1} parent=5 // pred_check
        _
      $region10: #{tpu_custom_call.1} parent=5 // pred_check_branch
        %252 = sbr.rel (%p249) target = $region12
      $region11: #{tpu_custom_call.1} parent=5 // pred_region
        %s253 = ssub.s32 %s17, 1
        // Predicated region
        $region13: #{tpu_custom_call.1} parent=11 // pred_check
          %p254 = pneg %p106
        $region14: #{tpu_custom_call.1} parent=11 // pred_check_branch
          %256 = sbr.rel (%p254) target = $region16
        $region15: #{tpu_custom_call.1} parent=11 // pred_region
          _
        $region16: #{tpu_custom_call.1} parent=11 // pred_fallthru
          _
        // Predicated region
        $region17: #{tpu_custom_call.1} parent=11 // pred_check
          %p257 = pneg %p127
        $region18: #{tpu_custom_call.1} parent=11 // pred_check_branch
          %259 = sbr.rel (%p257) target = $region20
        $region19: #{tpu_custom_call.1} parent=11 // pred_region
          _
        $region20: #{tpu_custom_call.1} parent=11 // pred_fallthru
          _
        // Predicated region
        $region21: #{tpu_custom_call.1} parent=11 // pred_check
          %p260 = pneg %p148
        $region22: #{tpu_custom_call.1} parent=11 // pred_check_branch
          %262 = sbr.rel (%p260) target = $region24
        $region23: #{tpu_custom_call.1} parent=11 // pred_region
          _
        $region24: #{tpu_custom_call.1} parent=11 // pred_fallthru
          _
        // Predicated region
        $region25: #{tpu_custom_call.1} parent=11 // pred_check
          %p263 = pneg %p169
        $region26: #{tpu_custom_call.1} parent=11 // pred_check_branch
          %265 = sbr.rel (%p263) target = $region28
        $region27: #{tpu_custom_call.1} parent=11 // pred_region
          _
        $region28: #{tpu_custom_call.1} parent=11 // pred_fallthru
          _
        // Predicated region
        $region29: #{tpu_custom_call.1} parent=11 // pred_check
          %p266 = pneg %p190
        $region30: #{tpu_custom_call.1} parent=11 // pred_check_branch
          %268 = sbr.rel (%p266) target = $region32
        $region31: #{tpu_custom_call.1} parent=11 // pred_region
          _
        $region32: #{tpu_custom_call.1} parent=11 // pred_fallthru
          _
        // Predicated region
        $region33: #{tpu_custom_call.1} parent=11 // pred_check
          %p269 = pneg %p211
        $region34: #{tpu_custom_call.1} parent=11 // pred_check_branch
          %271 = sbr.rel (%p269) target = $region36
        $region35: #{tpu_custom_call.1} parent=11 // pred_region
          _
        $region36: #{tpu_custom_call.1} parent=11 // pred_fallthru
          _
      $region12: #{tpu_custom_call.1} parent=5 // pred_fallthru
        _
      %p272 = scmp.lt.s32.totalorder %s17, 4
      // Predicated region
      $region37: #{tpu_custom_call.1} parent=5 // pred_check
        %p273 = pneg %p272
      $region38: #{tpu_custom_call.1} parent=5 // pred_check_branch
        %275 = sbr.rel (%p273) target = $region40
      $region39: #{tpu_custom_call.1} parent=5 // pred_region
        // Predicated region
        $region41: #{tpu_custom_call.1} parent=39 // pred_check
          %p276 = pneg %p51
        $region42: #{tpu_custom_call.1} parent=39 // pred_check_branch
          %278 = sbr.rel (%p276) target = $region44
        $region43: #{tpu_custom_call.1} parent=39 // pred_region
          %s279 = sand.u32 %s41, 1
          %s280 = scalar_lea.sflag [#allocation3], %s279
          %s281 = sand.u32 %s41, 1
          %s282 = smul.addr %s281, 32
          %s283 = scalar_lea.vmem [#allocation2], %s282
          %s285 = ssub.s32 512, 512
          %286 = vsyncadd %s280, %s285
          %s287 = smul.addr %s24, 8
          %s288 = sadd.s32 %s25, %s287
          %s289 = smul.addr %s288, 128
          %s290 = scalar_lea.hbm %s0, %s289
          %s291 = sshll.u32 %s283, 4
          %s292 = int_to_ptr.vmem [resolvable:$true] %s291
          %297 = dma.hbm_to_vmem [thread:$0]  %s290, 512, %s292, %s280, 256, 128, 8
        $region44: #{tpu_custom_call.1} parent=39 // pred_fallthru
          _
        // Predicated region
        $region45: #{tpu_custom_call.1} parent=39 // pred_check
          %p298 = pneg %p79
        $region46: #{tpu_custom_call.1} parent=39 // pred_check_branch
          %300 = sbr.rel (%p298) target = $region48
        $region47: #{tpu_custom_call.1} parent=39 // pred_region
          %p301 = scmp.lt.s32.totalorder %s24, 1
          %s302 = scalar_select %p301, %s24, 1
          %p303 = scmp.lt.s32.totalorder %s25, 1
          %s304 = scalar_select %p303, %s25, 1
          %s305 = smul.addr %s302, 2
          %s306 = sadd.s32 %s304, %s305
          %s307 = scalar_lea.vmem %s1, %s306
        $region48: #{tpu_custom_call.1} parent=39 // pred_fallthru
          _
      $region40: #{tpu_custom_call.1} parent=5 // pred_fallthru
        _
      %p308 = scmp.le.s32.totalorder 1, %s17
      %p309 = scmp.lt.s32.totalorder %s17, 5
      %p310 = pnand %p308, %p309
      %p311 = pneg %p310
      // Predicated region
      $region49: #{tpu_custom_call.1} parent=5 // pred_check
        _
      $region50: #{tpu_custom_call.1} parent=5 // pred_check_branch
        %313 = sbr.rel (%p310) target = $region52
      $region51: #{tpu_custom_call.1} parent=5 // pred_region
        %s314 = ssub.s32 %s17, 1
        %s315 = sand.u32 %s44, 1
        %s316 = scalar_lea.sflag [#allocation3], %s315
        %s317 = sand.u32 %s44, 1
        %s318 = smul.addr %s317, 32
        %s319 = scalar_lea.vmem [#allocation2], %s318
        // Predicated region
        $region53: #{tpu_custom_call.1} parent=51 // pred_check
          %p320 = pneg %p57
        $region54: #{tpu_custom_call.1} parent=51 // pred_check_branch
          %322 = sbr.rel (%p320) target = $region56
        $region55: #{tpu_custom_call.1} parent=51 // pred_region
          %323 = dma.done %s316, 512
        $region56: #{tpu_custom_call.1} parent=51 // pred_fallthru
          _
        %s324 = sand.u32 %s44, 1
        %s325 = scalar_lea.sflag [#allocation3], %s324
        %s326 = sand.u32 %s44, 1
        %s327 = smul.addr %s326, 32
        %s328 = scalar_lea.vmem [#allocation2], %s327
        %p329 = pneg %p57
        %p330 = pneg %p54
        %p331 = scmp.lt.s32.totalorder %s26, 1
        %s332 = scalar_select %p331, %s26, 1
        %p333 = scmp.lt.s32.totalorder %s27, 1
        %s334 = scalar_select %p333, %s27, 1
        %s335 = smul.addr %s332, 2
        %s336 = sadd.s32 %s334, %s335
        %s337 = scalar_lea.vmem %s1, %s336
        %p338 = pneg %p85
        %p339 = pneg %p82
        %p340 = pneg %p106
        %p341 = pneg %p103
        %p342 = pneg %p127
        %p343 = pneg %p124
        %p344 = pneg %p148
        %p345 = pneg %p145
        %p346 = pneg %p169
        %p347 = pneg %p166
        %p348 = pneg %p190
        %p349 = pneg %p187
        %p350 = pneg %p211
        %p351 = pneg %p208
        %p352 = pneg %p239
        %p353 = pneg %p236
        %p354 = scmp.lt.s32.totalorder %s26, 1
        %s355 = scalar_select %p354, %s26, 1
        %p356 = scmp.lt.s32.totalorder %s27, 1
        %s357 = scalar_select %p356, %s27, 1
        %s358 = smul.addr %s355, 2
        %s359 = sadd.s32 %s357, %s358
        %s360 = smul.addr %s359, 4
        %s361 = scalar_lea.vmem %s8, %s360
        %p362 = scmp.lt.s32.totalorder %s26, 1
        %s363 = scalar_select %p362, %s26, 1
        %p364 = scmp.lt.s32.totalorder %s27, 1
        %s365 = scalar_select %p364, %s27, 1
        %s366 = smul.addr %s363, 2
        %s367 = sadd.s32 %s365, %s366
        %s368 = scalar_lea.vmem %s1, %s367
        %p369 = scmp.lt.s32.totalorder %s26, 1
        %s370 = scalar_select %p369, %s26, 1
        %p371 = scmp.lt.s32.totalorder %s27, 1
        %s372 = scalar_select %p371, %s27, 1
        %s373 = smul.addr %s370, 2
        %s374 = sadd.s32 %s372, %s373
        %s375 = smul.addr %s374, 4
        %s376 = scalar_lea.vmem %s8, %s375
        %v377 = vld [vmem:[%s319] sm:$0xff]
        %v378 = vld [vmem:[%s319 + $0x8] sm:$0xff]
        %v379 = vld [vmem:[%s319 + $0x10] sm:$0xff]
        %v380 = vld [vmem:[%s319 + $0x18] sm:$0xff]
        %v381 = vld [vmem:[%s368] sm:$0x1]
        %v383 = vlaneseq
        %v384 = vshrl.u32 %v383, 7
        %v385 = vsub.s32 0, %v384
        %v386 = vrot.slane %v381, %v385
        %v388 = vmul.f32 %v377, %v386
        %v389 = vmul.f32 %v378, %v386
        %v390 = vmul.f32 %v379, %v386
        %v391 = vmul.f32 %v380, %v386
        %v392 = vld [vmem:[%s2] sm:$0xff]
        %v393 = vld [vmem:[%s2 + $0x8] sm:$0xff]
        %v394 = vld [vmem:[%s3] sm:$0xff]
        %v395 = vld [vmem:[%s3 + $0x8] sm:$0xff]
        %397 = vset.pattern.permute.xlu0 0
        %398 = vperm.xlu0 %397, %v394
        %v399 = vpop.permute.xlu0 %398
        %402 = vset.pattern.permute.xlu0 0
        %403 = vperm.xlu0 %402, %v395
        %v404 = vpop.permute.xlu0 %403
        %vm406 = vcmask 261120
        %v408 = vsel %vm406, %v392, 0
        %v411 = vsel %vm406, %v393, 0
        %413 = vmatprep.subr.mxu0 0.0
        %414 = vmatpush1.msra.mxu0 0.0
        %415 = vmatprep.subr.mxu0 0.0
        %416 = vmatpush1.msra.mxu0 0.0
        %417 = vmatprep.subr.mxu0 0.0
        %418 = vmatpush1.msra.mxu0 0.0
        %419 = vmatprep.subr.mxu0 0.0
        %420 = vmatpush1.msra.mxu0 0.0
        %421 = vmatprep.subr.mxu0 0.0
        %422 = vmatpush1.msra.mxu0 0.0
        %423 = vmatprep.subr.mxu0 0.0
        %424 = vmatpush1.msra.mxu0 0.0
        %425 = vmatprep.subr.mxu0 0.0
        %426 = vmatpush1.msra.mxu0 0.0
        %427 = vmatprep.subr.mxu0 0.0
        %428 = vmatpush1.msra.mxu0 0.0
        %429 = vmatprep.subr.mxu0 0.0
        %430 = vmatpush1.msra.mxu0 0.0
        %431 = vmatprep.subr.mxu0 0.0
        %432 = vmatpush1.msra.mxu0 0.0
        %433 = vmatprep.subr.mxu0 0.0
        %434 = vmatpush1.msra.mxu0 0.0
        %435 = vmatprep.subr.mxu0 0.0
        %436 = vmatpush1.msra.mxu0 0.0
        %437 = vmatprep.subr.mxu0 0.0
        %438 = vmatpush1.msra.mxu0 %v391
        %439 = vmatprep.subr.mxu0 0.0
        %440 = vmatpush1.msra.mxu0 %v390
        %441 = vmatprep.subr.mxu0 0.0
        %442 = vmatpush1.msra.mxu0 %v389
        %443 = vmatprep.subr.mxu0 0.0
        %444 = vmatpush1.msra.mxu0 %v388
        %445 = vmatprep.subr.mxu0 0.0
        %446 = vmatpush2.msra.mxu0 0.0
        %447 = vmatprep.subr.mxu0 0.0
        %448 = vmatpush2.msra.mxu0 0.0
        %449 = vmatprep.subr.mxu0 0.0
        %450 = vmatpush2.msra.mxu0 0.0
        %451 = vmatprep.subr.mxu0 0.0
        %452 = vmatpush2.msra.mxu0 0.0
        %453 = vmatprep.subr.mxu0 0.0
        %454 = vmatpush2.msra.mxu0 0.0
        %455 = vmatprep.subr.mxu0 0.0
        %456 = vmatpush2.msra.mxu0 0.0
        %457 = vmatprep.subr.mxu0 0.0
        %458 = vmatpush2.msra.mxu0 0.0
        %459 = vmatprep.subr.mxu0 0.0
        %460 = vmatpush2.msra.mxu0 0.0
        %461 = vmatprep.subr.mxu0 0.0
        %462 = vmatpush2.msra.mxu0 0.0
        %463 = vmatprep.subr.mxu0 0.0
        %464 = vmatpush2.msra.mxu0 0.0
        %465 = vmatprep.subr.mxu0 0.0
        %466 = vmatpush2.msra.mxu0 0.0
        %467 = vmatprep.subr.mxu0 0.0
        %468 = vmatpush2.msra.mxu0 0.0
        %469 = vmatprep.subr.mxu0 0.0
        %470 = vmatpush2.msra.mxu0 0.0
        %471 = vmatprep.subr.mxu0 0.0
        %472 = vmatpush2.msra.mxu0 0.0
        %473 = vmatprep.subr.mxu0 0.0
        %474 = vmatpush2.msra.mxu0 0.0
        %475 = vmatprep.subr.mxu0 0.0
        %476 = vmatpush2.msra.mxu0 0.0
        %477 = vmatprep.mubr.f32.mxu0 0.0
        %478 = vmatmul.mubr.f32.gmra.mxu0 %v408
        %v479 = vpop.f32.mrf.mxu0
        %v480 = vadd.f32 %v399, %v479
        %v481 = vpop.f32.mrf.mxu0
        %482 = vmatprep.mubr.f32.mxu0 0.0
        %483 = vmatmul.mubr.f32.gmra.mxu0 %v411
        %v484 = vpop.f32.mrf.mxu0
        %v485 = vadd.f32 %v404, %v484
        %v486 = vpop.f32.mrf.mxu0
        %487 = vdwg.mxu0
        %v488 = vmax.f32 %v480, 0.0
        %v489 = vmax.f32 %v485, 0.0
        %v490 = vld [vmem:[%s4] sm:$0xff]
        %v491 = vld [vmem:[%s5] sm:$0xff]
        %493 = vset.pattern.permute.xlu0 0
        %494 = vperm.xlu0 %493, %v491
        %v495 = vpop.permute.xlu0 %494
        %vm497 = vcmask 130048
        %v499 = vsel %vm497, %v490, 0
        %501 = vmatprep.subr.mxu0 0.0
        %502 = vmatpush1.msra.mxu0 0.0
        %503 = vmatprep.subr.mxu0 0.0
        %504 = vmatpush1.msra.mxu0 0.0
        %505 = vmatprep.subr.mxu0 0.0
        %506 = vmatpush1.msra.mxu0 0.0
        %507 = vmatprep.subr.mxu0 0.0
        %508 = vmatpush1.msra.mxu0 0.0
        %509 = vmatprep.subr.mxu0 0.0
        %510 = vmatpush1.msra.mxu0 0.0
        %511 = vmatprep.subr.mxu0 0.0
        %512 = vmatpush1.msra.mxu0 0.0
        %513 = vmatprep.subr.mxu0 0.0
        %514 = vmatpush1.msra.mxu0 0.0
        %515 = vmatprep.subr.mxu0 0.0
        %516 = vmatpush1.msra.mxu0 0.0
        %517 = vmatprep.subr.mxu0 0.0
        %518 = vmatpush1.msra.mxu0 0.0
        %519 = vmatprep.subr.mxu0 0.0
        %520 = vmatpush1.msra.mxu0 0.0
        %521 = vmatprep.subr.mxu0 0.0
        %522 = vmatpush1.msra.mxu0 0.0
        %523 = vmatprep.subr.mxu0 0.0
        %524 = vmatpush1.msra.mxu0 0.0
        %525 = vmatprep.subr.mxu0 0.0
        %526 = vmatpush1.msra.mxu0 0.0
        %527 = vmatprep.subr.mxu0 0.0
        %528 = vmatpush1.msra.mxu0 0.0
        %529 = vmatprep.subr.mxu0 0.0
        %530 = vmatpush1.msra.mxu0 %v489
        %531 = vmatprep.subr.mxu0 0.0
        %532 = vmatpush1.msra.mxu0 %v488
        %533 = vmatprep.subr.mxu0 0.0
        %534 = vmatpush2.msra.mxu0 0.0
        %535 = vmatprep.subr.mxu0 0.0
        %536 = vmatpush2.msra.mxu0 0.0
        %537 = vmatprep.subr.mxu0 0.0
        %538 = vmatpush2.msra.mxu0 0.0
        %539 = vmatprep.subr.mxu0 0.0
        %540 = vmatpush2.msra.mxu0 0.0
        %541 = vmatprep.subr.mxu0 0.0
        %542 = vmatpush2.msra.mxu0 0.0
        %543 = vmatprep.subr.mxu0 0.0
        %544 = vmatpush2.msra.mxu0 0.0
        %545 = vmatprep.subr.mxu0 0.0
        %546 = vmatpush2.msra.mxu0 0.0
        %547 = vmatprep.subr.mxu0 0.0
        %548 = vmatpush2.msra.mxu0 0.0
        %549 = vmatprep.subr.mxu0 0.0
        %550 = vmatpush2.msra.mxu0 0.0
        %551 = vmatprep.subr.mxu0 0.0
        %552 = vmatpush2.msra.mxu0 0.0
        %553 = vmatprep.subr.mxu0 0.0
        %554 = vmatpush2.msra.mxu0 0.0
        %555 = vmatprep.subr.mxu0 0.0
        %556 = vmatpush2.msra.mxu0 0.0
        %557 = vmatprep.subr.mxu0 0.0
        %558 = vmatpush2.msra.mxu0 0.0
        %559 = vmatprep.subr.mxu0 0.0
        %560 = vmatpush2.msra.mxu0 0.0
        %561 = vmatprep.subr.mxu0 0.0
        %562 = vmatpush2.msra.mxu0 0.0
        %563 = vmatprep.subr.mxu0 0.0
        %564 = vmatpush2.msra.mxu0 0.0
        %565 = vmatprep.mubr.f32.mxu0 0.0
        %566 = vmatmul.mubr.f32.gmra.mxu0 %v499
        %v567 = vpop.f32.mrf.mxu0
        %v568 = vadd.f32 %v495, %v567
        %v569 = vpop.f32.mrf.mxu0
        %570 = vdwg.mxu0
        %v571 = vmax.f32 %v568, 0.0
        %v572 = vld [vmem:[%s6] sm:$0x7]
        %v573 = vld [vmem:[%s7] sm:$0x7]
        %575 = vset.pattern.permute.xlu0 0
        %576 = vperm.xlu0 %575, %v573
        %v577 = vpop.permute.xlu0 %576
        %vm579 = vcmask 64512
        %v581 = vsel %vm579, %v572, 0
        %583 = vmatprep.subr.mxu0 0.0
        %584 = vmatpush1.msra.mxu0 0.0
        %585 = vmatprep.subr.mxu0 0.0
        %586 = vmatpush1.msra.mxu0 0.0
        %587 = vmatprep.subr.mxu0 0.0
        %588 = vmatpush1.msra.mxu0 0.0
        %589 = vmatprep.subr.mxu0 0.0
        %590 = vmatpush1.msra.mxu0 0.0
        %591 = vmatprep.subr.mxu0 0.0
        %592 = vmatpush1.msra.mxu0 0.0
        %593 = vmatprep.subr.mxu0 0.0
        %594 = vmatpush1.msra.mxu0 0.0
        %595 = vmatprep.subr.mxu0 0.0
        %596 = vmatpush1.msra.mxu0 0.0
        %597 = vmatprep.subr.mxu0 0.0
        %598 = vmatpush1.msra.mxu0 0.0
        %599 = vmatprep.subr.mxu0 0.0
        %600 = vmatpush1.msra.mxu0 0.0
        %601 = vmatprep.subr.mxu0 0.0
        %602 = vmatpush1.msra.mxu0 0.0
        %603 = vmatprep.subr.mxu0 0.0
        %604 = vmatpush1.msra.mxu0 0.0
        %605 = vmatprep.subr.mxu0 0.0
        %606 = vmatpush1.msra.mxu0 0.0
        %607 = vmatprep.subr.mxu0 0.0
        %608 = vmatpush1.msra.mxu0 0.0
        %609 = vmatprep.subr.mxu0 0.0
        %610 = vmatpush1.msra.mxu0 0.0
        %611 = vmatprep.subr.mxu0 0.0
        %612 = vmatpush1.msra.mxu0 0.0
        %613 = vmatprep.subr.mxu0 0.0
        %614 = vmatpush1.msra.mxu0 %v571
        %615 = vmatprep.subr.mxu0 0.0
        %616 = vmatpush2.msra.mxu0 0.0
        %617 = vmatprep.subr.mxu0 0.0
        %618 = vmatpush2.msra.mxu0 0.0
        %619 = vmatprep.subr.mxu0 0.0
        %620 = vmatpush2.msra.mxu0 0.0
        %621 = vmatprep.subr.mxu0 0.0
        %622 = vmatpush2.msra.mxu0 0.0
        %623 = vmatprep.subr.mxu0 0.0
        %624 = vmatpush2.msra.mxu0 0.0
        %625 = vmatprep.subr.mxu0 0.0
        %626 = vmatpush2.msra.mxu0 0.0
        %627 = vmatprep.subr.mxu0 0.0
        %628 = vmatpush2.msra.mxu0 0.0
        %629 = vmatprep.subr.mxu0 0.0
        %630 = vmatpush2.msra.mxu0 0.0
        %631 = vmatprep.subr.mxu0 0.0
        %632 = vmatpush2.msra.mxu0 0.0
        %633 = vmatprep.subr.mxu0 0.0
        %634 = vmatpush2.msra.mxu0 0.0
        %635 = vmatprep.subr.mxu0 0.0
        %636 = vmatpush2.msra.mxu0 0.0
        %637 = vmatprep.subr.mxu0 0.0
        %638 = vmatpush2.msra.mxu0 0.0
        %639 = vmatprep.subr.mxu0 0.0
        %640 = vmatpush2.msra.mxu0 0.0
        %641 = vmatprep.subr.mxu0 0.0
        %642 = vmatpush2.msra.mxu0 0.0
        %643 = vmatprep.subr.mxu0 0.0
        %644 = vmatpush2.msra.mxu0 0.0
        %645 = vmatprep.subr.mxu0 0.0
        %646 = vmatpush2.msra.mxu0 0.0
        %647 = vmatprep.mubr.f32.mxu0 0.0
        %648 = vmatmul.mubr.f32.gmra.mxu0 %v581
        %v649 = vpop.f32.mrf.mxu0
        %v650 = vadd.f32 %v577, %v649
        %v651 = vpop.f32.mrf.mxu0
        %652 = vdwg.mxu0
        %653 = vst [vmem:[%s376] sm:$0x7] %v650
        %p654 = scmp.lt.s32.totalorder %s26, 1
        %s655 = scalar_select %p654, %s26, 1
        %p656 = scmp.lt.s32.totalorder %s27, 1
        %s657 = scalar_select %p656, %s27, 1
        %s658 = smul.addr %s655, 2
        %s659 = sadd.s32 %s657, %s658
        %s660 = smul.addr %s659, 4
        %s661 = scalar_lea.vmem %s8, %s660
        // Predicated region
        $region57: #{tpu_custom_call.1} parent=51 // pred_check
          %p662 = pneg %p236
        $region58: #{tpu_custom_call.1} parent=51 // pred_check_branch
          %664 = sbr.rel (%p662) target = $region60
        $region59: #{tpu_custom_call.1} parent=51 // pred_region
          _
        $region60: #{tpu_custom_call.1} parent=51 // pred_fallthru
          _
      $region52: #{tpu_custom_call.1} parent=5 // pred_fallthru
        _
      %p665 = scmp.le.s32.totalorder 2, %s17
      // Predicated region
      $region61: #{tpu_custom_call.1} parent=5 // pred_check
        %p666 = pneg %p665
      $region62: #{tpu_custom_call.1} parent=5 // pred_check_branch
        %668 = sbr.rel (%p666) target = $region64
      $region63: #{tpu_custom_call.1} parent=5 // pred_region
        %s669 = ssub.s32 %s17, 2
        // Predicated region
        $region65: #{tpu_custom_call.1} parent=63 // pred_check
          %p670 = pneg %p242
        $region66: #{tpu_custom_call.1} parent=63 // pred_check_branch
          %672 = sbr.rel (%p670) target = $region68
        $region67: #{tpu_custom_call.1} parent=63 // pred_region
          %p673 = scmp.lt.s32.totalorder %s28, 1
          %s674 = scalar_select %p673, %s28, 1
          %p675 = scmp.lt.s32.totalorder %s29, 1
          %s676 = scalar_select %p675, %s29, 1
          %s677 = smul.addr %s674, 2
          %s678 = sadd.s32 %s676, %s677
          %s679 = smul.addr %s678, 4
          %s680 = scalar_lea.vmem %s8, %s679
        $region68: #{tpu_custom_call.1} parent=63 // pred_fallthru
          _
      $region64: #{tpu_custom_call.1} parent=5 // pred_fallthru
        _
    $region6: #{tpu_custom_call.1} parent=1 // loop_footer
      %s21 = sadd.s32 1, %s17
    $region7: #{tpu_custom_call.1} parent=1 // loop_footer_branch
      %16 = sbr.rel target = $region3
    $region8: #{tpu_custom_call.1} parent=1 // loop_exit
      _
    %681 = vsyncpa [#allocation3], 1
    %s682 = scalar_lea.sflag [#allocation3], 1
    %683 = vsyncpa %s682, 1

</llo_original>
